<compile_context>
chip_gen: v7x
topology: tpu7x:2x2x1
jax: 0.10.0
libtpu: 0.0.40
codegen_flags: <defaults>
</compile_context>

<pallas_src>
import functools

import numpy as np

import jax
import jax.numpy as jnp
from jax import lax
from jax.experimental import pallas as pl
from jax.experimental.pallas import tpu as pltpu

BN_EPS = 1e-5


def _out_hw(size, stride):
    # 3x3 kernel, padding 1: floor((size + 2 - 3)/stride) + 1
    return (size - 1) // stride + 1


def _choose_block_batch(n, per_image_bytes, max_b=8, budget_bytes=4 << 20):
    """Images per grid step: amortize the ~0.35us/step overhead with multi-image
    DMAs while (a) staying inside a conservative per-step VMEM budget (v7x has
    only 64 MiB physical / 32 MiB scoped default) and (b) keeping the grid >= 2
    so the two v7x TensorCores both get work."""
    b = max(1, min(max_b, budget_bytes // max(int(per_image_bytes), 1)))
    b = min(b, n)
    if n >= 2:
        b = min(b, -(-n // 2))          # cdiv(n, 2): grid stays >= 2
    return int(max(b, 1))


def _pool_geometry(H, W, stride, mode):
    """Trace-time (numpy) pooling geometry.

    Returns (Ho, Wo, bmask, inv, sel):
      bmask (4, H*W) f32 {0,1}: [west, east, north, south] neighbour-in-bounds
      inv   (1, H*W) f32 or None: 1/count map      (stride==1 and mode=='avg')
      sel   (H*W, Ho*Wo) f32 or None: strided subsample selection matrix with
            the avg 1/count already folded in       (stride > 1)
    """
    Ho, Wo = _out_hw(H, stride), _out_hw(W, stride)
    HW = H * W
    flat = np.arange(HW)
    row, col = flat // W, flat % W
    bmask = np.stack([col > 0, col < W - 1, row > 0, row < H - 1],
                     axis=0).astype(np.float32)                       # (4, HW)

    def n_valid(center, size):
        return np.minimum(center + 1, size - 1) - np.maximum(center - 1, 0) + 1

    inv, sel = None, None
    if stride == 1:
        if mode == 'avg':
            inv = (1.0 / (n_valid(row, H) * n_valid(col, W))).astype(np.float32)
            inv = inv.reshape(1, HW)
    else:
        oflat = np.arange(Ho * Wo)
        orow, ocol = stride * (oflat // Wo), stride * (oflat % Wo)
        if mode == 'avg':
            val = 1.0 / (n_valid(orow, H) * n_valid(ocol, W))         # 1/count
        else:
            val = np.ones(Ho * Wo)                                    # plain pick
        sel = np.zeros((HW, Ho * Wo), np.float32)
        sel[orow * W + ocol, oflat] = val
    return Ho, Wo, bmask, inv, sel


# ----------------------------- pool (+ fused preprocess) kernel ----------------
def _make_pool_kernel(mode, stride, H, W, B, preprocess, has_inv, has_sel):
    HW = H * W

    def taps(v, wm, em, nm, sm):
        """3x3 pooling taps on a flattened-spatial array (..., H*W) via lane
        rotations; boundary handling through the precomputed {0,1} masks."""
        ax = v.ndim - 1
        if mode == 'avg':
            # out-of-bounds neighbours contribute 0 (divisor handled by inv/sel)
            h3 = (v + pltpu.roll(v, 1, axis=ax) * wm
                    + pltpu.roll(v, HW - 1, axis=ax) * em)
            return (h3 + pltpu.roll(h3, W, axis=ax) * nm
                       + pltpu.roll(h3, HW - W, axis=ax) * sm)
        # max: out-of-bounds neighbours are replaced by the centre value
        # (always included in the window), so no -inf / NaN anywhere.
        l = jnp.where(wm > 0, pltpu.roll(v, 1, axis=ax), v)
        r = jnp.where(em > 0, pltpu.roll(v, HW - 1, axis=ax), v)
        h3 = jnp.maximum(jnp.maximum(l, r), v)
        u = jnp.where(nm > 0, pltpu.roll(h3, W, axis=ax), h3)
        d = jnp.where(sm > 0, pltpu.roll(h3, HW - W, axis=ax), h3)
        return jnp.maximum(jnp.maximum(u, d), h3)

    def kernel(*refs):
        it = iter(refs)
        x_ref = next(it)
        if preprocess:
            w_ref, scale_ref, shift_ref = next(it), next(it), next(it)
        bm_ref = next(it)
        inv_ref = next(it) if has_inv else None
        sel_ref = next(it) if has_sel else None
        o_ref = next(it)

        wm = bm_ref[0:1, :]
        em = bm_ref[1:2, :]
        nm = bm_ref[2:3, :]
        sm = bm_ref[3:4, :]
        inv = inv_ref[...] if has_inv else None
        sel = sel_ref[...] if has_sel else None

        if preprocess:
            w = w_ref[...].astype(jnp.float32)
            scale, shift = scale_ref[...], shift_ref[...]
            for b in range(B):                 # static unroll, per-image 2D math
                xb = jnp.maximum(x_ref[b].astype(jnp.float32), 0.0)      # ReLU
                yb = jnp.dot(w, xb, preferred_element_type=jnp.float32)  # 1x1 conv
                yb = yb * scale + shift                                  # BN affine
                pb = taps(yb, wm, em, nm, sm)                            # (Cout, HW)
                if has_sel:
                    ob = jnp.dot(pb, sel, preferred_element_type=jnp.float32)
                elif has_inv:
                    ob = pb * inv
                else:
                    ob = pb
                o_ref[b] = ob.astype(o_ref.dtype)
        else:
            x = x_ref[...].astype(jnp.float32)                           # (B, C, HW)
            p = taps(x, wm, em, nm, sm)
            if has_sel:
                for b in range(B):
                    o_ref[b] = jnp.dot(p[b], sel,
                                       preferred_element_type=jnp.float32
                                       ).astype(o_ref.dtype)
            elif has_inv:
                o_ref[...] = (p * inv).astype(o_ref.dtype)
            else:
                o_ref[...] = p.astype(o_ref.dtype)

    return kernel


def _pool_pass(x_flat, H, W, stride, mode, conv=None):
    """x_flat: (N, C_in, H*W). conv: optional (w (C_out,C_in), scale (C_out,),
    shift (C_out,)) for the fused ReLU -> 1x1 conv -> BN preprocess.
    Returns ((N, C_out, Ho*Wo) array in x_flat.dtype, Ho, Wo)."""
    N, Cin, HW = x_flat.shape
    preprocess = conv is not None
    Cout = conv[0].shape[0] if preprocess else Cin
    Ho, Wo, bmask_np, inv_np, sel_np = _pool_geometry(H, W, stride, mode)
    has_inv, has_sel = inv_np is not None, sel_np is not None

    itemsize = jnp.dtype(x_flat.dtype).itemsize
    per_image = Cin * HW * itemsize + Cout * Ho * Wo * itemsize
    B = _choose_block_batch(N, per_image)
    grid = (pl.cdiv(N, B),)

    kernel = _make_pool_kernel(mode, stride, H, W, B, preprocess, has_inv, has_sel)

    in_specs = [pl.BlockSpec((B, Cin, HW), lambda n: (n, 0, 0))]
    args = [x_flat]
    if preprocess:
        w, scale, shift = conv
        in_specs += [pl.BlockSpec((Cout, Cin), lambda n: (0, 0)),
                     pl.BlockSpec((Cout, 1), lambda n: (0, 0)),
                     pl.BlockSpec((Cout, 1), lambda n: (0, 0))]
        args += [w.astype(jnp.float32),
                 scale.reshape(Cout, 1).astype(jnp.float32),
                 shift.reshape(Cout, 1).astype(jnp.float32)]
    in_specs.append(pl.BlockSpec((4, HW), lambda n: (0, 0)))
    args.append(jnp.asarray(bmask_np))
    if has_inv:
        in_specs.append(pl.BlockSpec((1, HW), lambda n: (0, 0)))
        args.append(jnp.asarray(inv_np))
    if has_sel:
        in_specs.append(pl.BlockSpec((HW, Ho * Wo), lambda n: (0, 0)))
        args.append(jnp.asarray(sel_np))

    out = pl.pallas_call(
        kernel,
        out_shape=jax.ShapeDtypeStruct((N, Cout, Ho * Wo), x_flat.dtype),
        grid=grid,
        in_specs=in_specs,
        out_specs=pl.BlockSpec((B, Cout, Ho * Wo), lambda n: (n, 0, 0)),
        compiler_params=pltpu.CompilerParams(
            dimension_semantics=("parallel",),
            vmem_limit_bytes=32 * 1024 * 1024),
    )(*args)
    return out, Ho, Wo


# -------------------- pass 1: per-block BN partial sums (stats only) -----------
def _make_stats_kernel(B, n_total):
    def kernel(x_ref, w_ref, stats_ref):
        w = w_ref[...].astype(jnp.float32)
        Cout = w.shape[0]
        s = jnp.zeros((Cout, 1), jnp.float32)
        ss = jnp.zeros((Cout, 1), jnp.float32)
        base = pl.program_id(0) * B
        for b in range(B):
            xb = jnp.maximum(x_ref[b].astype(jnp.float32), 0.0)          # ReLU
            yb = jnp.dot(w, xb, preferred_element_type=jnp.float32)      # 1x1 conv
            valid = (base + b) < n_total        # guard padded tail of last block
            s = s + jnp.where(valid, jnp.sum(yb, axis=1, keepdims=True), 0.0)
            ss = ss + jnp.where(valid, jnp.sum(yb * yb, axis=1, keepdims=True), 0.0)
        stats_ref[0] = jnp.concatenate([s, ss], axis=1)                  # (Cout, 2)
    return kernel


def _bn_batch_stats(x_flat, w):
    """Returns (sum_y, sum_y2), each (C_out,) f32, of the preprocessed
    activations over the whole batch — without materializing them in HBM."""
    N, Cin, HW = x_flat.shape
    Cout = w.shape[0]
    itemsize = jnp.dtype(x_flat.dtype).itemsize
    B = _choose_block_batch(N, Cin * HW * itemsize)
    nblk = pl.cdiv(N, B)
    stats = pl.pallas_call(
        _make_stats_kernel(B, N),
        out_shape=jax.ShapeDtypeStruct((nblk, Cout, 2), jnp.float32),
        grid=(nblk,),
        in_specs=[pl.BlockSpec((B, Cin, HW), lambda n: (n, 0, 0)),
                  pl.BlockSpec((Cout, Cin), lambda n: (0, 0))],
        out_specs=pl.BlockSpec((1, Cout, 2), lambda n: (n, 0, 0)),
        compiler_params=pltpu.CompilerParams(
            dimension_semantics=("parallel",),
            vmem_limit_bytes=32 * 1024 * 1024),
    )(x_flat, w.astype(jnp.float32))
    return jnp.sum(stats[:, :, 0], axis=0), jnp.sum(stats[:, :, 1], axis=0)


# ------------------------------ POOLING forward --------------------------------
@functools.partial(jax.jit, static_argnames=("stride", "mode"))
def pooling_forward(x_nchw, stride, mode, params=None):
    """POOLING.forward on NCHW input. When C_in != C_out, pass
    params={'w': (C_out, C_in) 1x1 conv weight, 'gamma': (C_out,), 'beta': (C_out,)}."""
    if mode not in ('avg', 'max'):
        raise ValueError(f'Invalid mode={mode} in POOLING')
    N, Cin, H, W = x_nchw.shape
    x_flat = x_nchw.reshape(N, Cin, H * W)          # contiguous -> free reshape

    conv = None
    if params is not None:
        w = params['w'].astype(jnp.float32)         # (C_out, C_in)
        Cout = w.shape[0]
        gamma = params.get('gamma')
        beta = params.get('beta')
        gamma = jnp.ones((Cout,), jnp.float32) if gamma is None else gamma.astype(jnp.float32)
        beta = jnp.zeros((Cout,), jnp.float32) if beta is None else beta.astype(jnp.float32)

        # Pass 1: per-block BN partial sums only (the preprocessed activations
        # never round-trip through HBM; pass 2 recomputes them in VMEM).
        sum_y, sum_y2 = _bn_batch_stats(x_flat, w)
        total = jnp.float32(N * H * W)
        mean = sum_y / total
        # TODO(synk): E[y^2]-E[y]^2 in f32 can lose precision for very large
        # N*H*W / activations vs PyTorch; clamped at 0 (Welford not implemented).
        var = jnp.maximum(sum_y2 / total - mean * mean, 0.0)
        scale = gamma * lax.rsqrt(var + BN_EPS)
        shift = beta - mean * scale
        conv = (w, scale, shift)

    out, Ho, Wo = _pool_pass(x_flat, H, W, stride, mode, conv=conv)
    return out.reshape(out.shape[0], out.shape[1], Ho, Wo)


# ------------------------------ numpy reference --------------------------------
def _reference(x, stride, mode, params=None):
    x = np.asarray(x, np.float64)
    if params is not None:
        w = np.asarray(params['w'], np.float64)
        g = np.asarray(params['gamma'], np.float64)
        b = np.asarray(params['beta'], np.float64)
        y = np.einsum('oc,nchw->nohw', w, np.maximum(x, 0.0))
        mu = y.mean(axis=(0, 2, 3))
        var = y.var(axis=(0, 2, 3))                 # biased batch variance
        x = (y - mu[None, :, None, None]) / np.sqrt(var[None, :, None, None] + BN_EPS)
        x = x * g[None, :, None, None] + b[None, :, None, None]
    N, C, H, W = x.shape
    Ho, Wo = _out_hw(H, stride), _out_hw(W, stride)
    out = np.zeros((N, C, Ho, Wo))
    for ho in range(Ho):
        for wo in range(Wo):
            r0, r1 = max(ho * stride - 1, 0), min(ho * stride + 1, H - 1)
            c0, c1 = max(wo * stride - 1, 0), min(wo * stride + 1, W - 1)
            win = x[:, :, r0:r1 + 1, c0:c1 + 1]
            out[:, :, ho, wo] = (win.max(axis=(2, 3)) if mode == 'max'
                                 else win.mean(axis=(2, 3)))
    return out


if __name__ == "__main__":
    key = jax.random.PRNGKey(0)
    kx, kw = jax.random.split(key)

    # Small shapes consistent with the module: N=2, C_in=4, C_out=8, HxW=16x16
    N, C_in, C_out, H, W = 2, 4, 8, 16, 16
    x = jax.random.normal(kx, (N, C_in, H, W), jnp.float32)

    # 1x1 conv weight in PyTorch (C_out, C_in, 1, 1) layout + BN affine params.
    w_pt = 0.1 * jax.random.normal(kw, (C_out, C_in, 1, 1), jnp.float32)
    params = {
        'w': w_pt[:, :, 0, 0],                          # (C_out, C_in)
        'gamma': jnp.ones((C_out,), jnp.float32),
        'beta': jnp.zeros((C_out,), jnp.float32),
    }

    cases = [
        dict(stride=2, mode='avg', params=params),   # preprocess + strided avg
        dict(stride=1, mode='max', params=None),     # identity + max, stride 1
        dict(stride=2, mode='max', params=None),     # identity + strided max
        dict(stride=1, mode='avg', params=params),   # preprocess + avg, stride 1
    ]
    for c in cases:
        y = jax.block_until_ready(
            pooling_forward(x, stride=c['stride'], mode=c['mode'], params=c['params']))
        c_exp = C_out if c['params'] is not None else C_in
        ho, wo = _out_hw(H, c['stride']), _out_hw(W, c['stride'])
        assert y.shape == (N, c_exp, ho, wo), (y.shape, c)
        ref = _reference(x, c['stride'], c['mode'], c['params'])
        err = float(np.max(np.abs(np.asarray(y, np.float64) - ref)))
        assert np.allclose(np.asarray(y, np.float64), ref, atol=2e-3, rtol=2e-3), (c, err)

    print("KERNEL_OK")
</pallas_src>

<mosaic_0001>
module attributes {stable_mosaic.version = 11 : i64} {
  func.func @kernel(%arg0: i32, %arg1: memref<1x4x256xf32, #tpu.memory_space<vmem>>, %arg2: memref<8x4xf32, #tpu.memory_space<vmem>>, %arg3: memref<1x8x2xf32, #tpu.memory_space<vmem>>) attributes {dimension_semantics = [#tpu.dimension_semantics<parallel>], iteration_bounds = array<i64: 2>, scalar_prefetch = 0 : i64, scratch_operands = 0 : i64, tpu.core_type = #tpu.core_type<tc>, window_params = [{transform_indices = @transform_0, window_bounds = array<i64: 1, 4, 256>}, {pipeline_mode = #tpu.pipeline_mode<synchronous>, transform_indices = @transform_1, window_bounds = array<i64: 8, 4>}, {transform_indices = @transform_2, window_bounds = array<i64: 1, 8, 2>}]} {
    %c0 = arith.constant 0 : index
    %c0_0 = arith.constant 0 : index
    %0 = vector.load %arg2[%c0, %c0_0] : memref<8x4xf32, #tpu.memory_space<vmem>>, vector<8x4xf32>
    %cst = arith.constant 0.000000e+00 : f32
    %1 = vector.broadcast %cst : f32 to vector<8x1xf32>
    %cst_1 = arith.constant 0.000000e+00 : f32
    %2 = vector.broadcast %cst_1 : f32 to vector<8x1xf32>
    %c1_i32 = arith.constant 1 : i32
    %3 = arith.muli %arg0, %c1_i32 : i32
    %c0_2 = arith.constant 0 : index
    %c0_3 = arith.constant 0 : index
    %c0_4 = arith.constant 0 : index
    %4 = vector.load %arg1[%c0_2, %c0_3, %c0_4] : memref<1x4x256xf32, #tpu.memory_space<vmem>>, vector<1x4x256xf32>
    %5 = vector.shape_cast %4 : vector<1x4x256xf32> to vector<4x256xf32>
    %cst_5 = arith.constant 0.000000e+00 : f32
    %6 = vector.broadcast %cst_5 : f32 to vector<4x256xf32>
    %7 = arith.maximumf %5, %6 : vector<4x256xf32>
    %cst_6 = arith.constant dense<0.000000e+00> : vector<8x256xf32>
    %8 = tpu.matmul %0, %7, %cst_6 {dimension_numbers = #tpu.dot_dimension_numbers<[1], [0], [0], [1], [0, 0, 1, 1], [], []>} : vector<8x4xf32>, vector<4x256xf32>, vector<8x256xf32> -> vector<8x256xf32>
    %c0_i32 = arith.constant 0 : i32
    %9 = arith.addi %3, %c0_i32 : i32
    %c2_i32 = arith.constant 2 : i32
    %10 = arith.cmpi slt, %9, %c2_i32 : i32
    %cst_7 = arith.constant dense<0.000000e+00> : vector<8xf32>
    %11 = vector.multi_reduction <add>, %8, %cst_7 [1] : vector<8x256xf32> to vector<8xf32>
    %12 = vector.shape_cast %11 : vector<8xf32> to vector<8x1xf32>
    %cst_8 = arith.constant 0.000000e+00 : f32
    %13 = vector.broadcast %cst_8 : f32 to vector<8x1xf32>
    %14 = arith.select %10, %12, %13 : vector<8x1xf32>
    %15 = arith.addf %1, %14 : vector<8x1xf32>
    %16 = arith.mulf %8, %8 : vector<8x256xf32>
    %cst_9 = arith.constant dense<0.000000e+00> : vector<8xf32>
    %17 = vector.multi_reduction <add>, %16, %cst_9 [1] : vector<8x256xf32> to vector<8xf32>
    %18 = vector.shape_cast %17 : vector<8xf32> to vector<8x1xf32>
    %cst_10 = arith.constant 0.000000e+00 : f32
    %19 = vector.broadcast %cst_10 : f32 to vector<8x1xf32>
    %20 = arith.select %10, %18, %19 : vector<8x1xf32>
    %21 = arith.addf %2, %20 : vector<8x1xf32>
    %22 = tpu.concatenate %15, %21 in 1 : vector<8x1xf32>, vector<8x1xf32> -> vector<8x2xf32>
    %c0_11 = arith.constant 0 : index
    %c0_12 = arith.constant 0 : index
    %c0_13 = arith.constant 0 : index
    %23 = vector.load %arg3[%c0_11, %c0_12, %c0_13] : memref<1x8x2xf32, #tpu.memory_space<vmem>>, vector<1x8x2xf32>
    %24 = vector.shape_cast %23 : vector<1x8x2xf32> to vector<8x2xf32>
    %25 = vector.shape_cast %22 : vector<8x2xf32> to vector<1x8x2xf32>
    tpu.vector_store %arg3[%c0_11, %c0_12, %c0_13], %25 {strides = array<i32>} : memref<1x8x2xf32, #tpu.memory_space<vmem>>, vector<1x8x2xf32>,
    return
  }
  func.func @transform_0(%arg0: i32) -> (i32, i32, i32) {
    %c0_i32 = arith.constant 0 : i32
    %c0_i32_0 = arith.constant 0 : i32
    %c0_i32_1 = arith.constant 0 : i32
    return %arg0, %c0_i32, %c0_i32_0 : i32, i32, i32
  }
  func.func @transform_1(%arg0: i32) -> (i32, i32) {
    %c0_i32 = arith.constant 0 : i32
    %c0_i32_0 = arith.constant 0 : i32
    %c0_i32_1 = arith.constant 0 : i32
    return %c0_i32, %c0_i32_0 : i32, i32
  }
  func.func @transform_2(%arg0: i32) -> (i32, i32, i32) {
    %c0_i32 = arith.constant 0 : i32
    %c0_i32_0 = arith.constant 0 : i32
    %c0_i32_1 = arith.constant 0 : i32
    return %arg0, %c0_i32, %c0_i32_0 : i32, i32, i32
  }
}

module attributes {stable_mosaic.version = 11 : i64} {
  func.func @kernel(%arg0: i32, %arg1: memref<1x4x256xf32, #tpu.memory_space<vmem>>, %arg2: memref<8x4xf32, #tpu.memory_space<vmem>>, %arg3: memref<8x1xf32, #tpu.memory_space<vmem>>, %arg4: memref<8x1xf32, #tpu.memory_space<vmem>>, %arg5: memref<4x256xf32, #tpu.memory_space<vmem>>, %arg6: memref<256x64xf32, #tpu.memory_space<vmem>>, %arg7: memref<1x8x64xf32, #tpu.memory_space<vmem>>) attributes {dimension_semantics = [#tpu.dimension_semantics<parallel>], iteration_bounds = array<i64: 2>, scalar_prefetch = 0 : i64, scratch_operands = 0 : i64, tpu.core_type = #tpu.core_type<tc>, window_params = [{transform_indices = @transform_0, window_bounds = array<i64: 1, 4, 256>}, {pipeline_mode = #tpu.pipeline_mode<synchronous>, transform_indices = @transform_1, window_bounds = array<i64: 8, 4>}, {pipeline_mode = #tpu.pipeline_mode<synchronous>, transform_indices = @transform_2, window_bounds = array<i64: 8, 1>}, {pipeline_mode = #tpu.pipeline_mode<synchronous>, transform_indices = @transform_3, window_bounds = array<i64: 8, 1>}, {pipeline_mode = #tpu.pipeline_mode<synchronous>, transform_indices = @transform_4, window_bounds = array<i64: 4, 256>}, {pipeline_mode = #tpu.pipeline_mode<synchronous>, transform_indices = @transform_5, window_bounds = array<i64: 256, 64>}, {transform_indices = @transform_6, window_bounds = array<i64: 1, 8, 64>}]} {
    %c0 = arith.constant 0 : index
    %c0_0 = arith.constant 0 : index
    %0 = vector.load %arg5[%c0, %c0_0] : memref<4x256xf32, #tpu.memory_space<vmem>>, vector<1x256xf32>
    %c1 = arith.constant 1 : index
    %c0_1 = arith.constant 0 : index
    %1 = vector.load %arg5[%c1, %c0_1] : memref<4x256xf32, #tpu.memory_space<vmem>>, vector<1x256xf32>
    %c2 = arith.constant 2 : index
    %c0_2 = arith.constant 0 : index
    %2 = vector.load %arg5[%c2, %c0_2] : memref<4x256xf32, #tpu.memory_space<vmem>>, vector<1x256xf32>
    %c3 = arith.constant 3 : index
    %c0_3 = arith.constant 0 : index
    %3 = vector.load %arg5[%c3, %c0_3] : memref<4x256xf32, #tpu.memory_space<vmem>>, vector<1x256xf32>
    %c0_4 = arith.constant 0 : index
    %c0_5 = arith.constant 0 : index
    %4 = vector.load %arg6[%c0_4, %c0_5] : memref<256x64xf32, #tpu.memory_space<vmem>>, vector<256x64xf32>
    %c0_6 = arith.constant 0 : index
    %c0_7 = arith.constant 0 : index
    %5 = vector.load %arg2[%c0_6, %c0_7] : memref<8x4xf32, #tpu.memory_space<vmem>>, vector<8x4xf32>
    %c0_8 = arith.constant 0 : index
    %c0_9 = arith.constant 0 : index
    %6 = vector.load %arg3[%c0_8, %c0_9] : memref<8x1xf32, #tpu.memory_space<vmem>>, vector<8x1xf32>
    %c0_10 = arith.constant 0 : index
    %c0_11 = arith.constant 0 : index
    %7 = vector.load %arg4[%c0_10, %c0_11] : memref<8x1xf32, #tpu.memory_space<vmem>>, vector<8x1xf32>
    %c0_12 = arith.constant 0 : index
    %c0_13 = arith.constant 0 : index
    %c0_14 = arith.constant 0 : index
    %8 = vector.load %arg1[%c0_12, %c0_13, %c0_14] : memref<1x4x256xf32, #tpu.memory_space<vmem>>, vector<1x4x256xf32>
    %9 = vector.shape_cast %8 : vector<1x4x256xf32> to vector<4x256xf32>
    %cst = arith.constant 0.000000e+00 : f32
    %10 = vector.broadcast %cst : f32 to vector<4x256xf32>
    %11 = arith.maximumf %9, %10 : vector<4x256xf32>
    %cst_15 = arith.constant dense<0.000000e+00> : vector<8x256xf32>
    %12 = tpu.matmul %5, %11, %cst_15 {dimension_numbers = #tpu.dot_dimension_numbers<[1], [0], [0], [1], [0, 0, 1, 1], [], []>} : vector<8x4xf32>, vector<4x256xf32>, vector<8x256xf32> -> vector<8x256xf32>
    %13 = vector.broadcast %6 : vector<8x1xf32> to vector<8x256xf32>
    %14 = arith.mulf %12, %13 : vector<8x256xf32>
    %15 = vector.broadcast %7 : vector<8x1xf32> to vector<8x256xf32>
    %16 = arith.addf %14, %15 : vector<8x256xf32>
    %c1_i32 = arith.constant 1 : i32
    %17 = tpu.dynamic_rotate %16 by %c1_i32 dim 1 : vector<8x256xf32>, i32 -> vector<8x256xf32>
    %18 = vector.broadcast %0 : vector<1x256xf32> to vector<8x256xf32>
    %19 = arith.mulf %17, %18 : vector<8x256xf32>
    %20 = arith.addf %16, %19 : vector<8x256xf32>
    %c255_i32 = arith.constant 255 : i32
    %21 = tpu.dynamic_rotate %16 by %c255_i32 dim 1 : vector<8x256xf32>, i32 -> vector<8x256xf32>
    %22 = vector.broadcast %1 : vector<1x256xf32> to vector<8x256xf32>
    %23 = arith.mulf %21, %22 : vector<8x256xf32>
    %24 = arith.addf %20, %23 : vector<8x256xf32>
    %c16_i32 = arith.constant 16 : i32
    %25 = tpu.dynamic_rotate %24 by %c16_i32 dim 1 : vector<8x256xf32>, i32 -> vector<8x256xf32>
    %26 = vector.broadcast %2 : vector<1x256xf32> to vector<8x256xf32>
    %27 = arith.mulf %25, %26 : vector<8x256xf32>
    %28 = arith.addf %24, %27 : vector<8x256xf32>
    %c240_i32 = arith.constant 240 : i32
    %29 = tpu.dynamic_rotate %24 by %c240_i32 dim 1 : vector<8x256xf32>, i32 -> vector<8x256xf32>
    %30 = vector.broadcast %3 : vector<1x256xf32> to vector<8x256xf32>
    %31 = arith.mulf %29, %30 : vector<8x256xf32>
    %32 = arith.addf %28, %31 : vector<8x256xf32>
    %cst_16 = arith.constant dense<0.000000e+00> : vector<8x64xf32>
    %33 = tpu.matmul %32, %4, %cst_16 {dimension_numbers = #tpu.dot_dimension_numbers<[1], [0], [0], [1], [0, 0, 1, 1], [], []>} : vector<8x256xf32>, vector<256x64xf32>, vector<8x64xf32> -> vector<8x64xf32>
    %c0_17 = arith.constant 0 : index
    %c0_18 = arith.constant 0 : index
    %c0_19 = arith.constant 0 : index
    %34 = vector.load %arg7[%c0_17, %c0_18, %c0_19] : memref<1x8x64xf32, #tpu.memory_space<vmem>>, vector<1x8x64xf32>
    %35 = vector.shape_cast %34 : vector<1x8x64xf32> to vector<8x64xf32>
    %36 = vector.shape_cast %33 : vector<8x64xf32> to vector<1x8x64xf32>
    tpu.vector_store %arg7[%c0_17, %c0_18, %c0_19], %36 {strides = array<i32>} : memref<1x8x64xf32, #tpu.memory_space<vmem>>, vector<1x8x64xf32>,
    return
  }
  func.func @transform_0(%arg0: i32) -> (i32, i32, i32) {
    %c0_i32 = arith.constant 0 : i32
    %c0_i32_0 = arith.constant 0 : i32
    %c0_i32_1 = arith.constant 0 : i32
    return %arg0, %c0_i32, %c0_i32_0 : i32, i32, i32
  }
  func.func @transform_1(%arg0: i32) -> (i32, i32) {
    %c0_i32 = arith.constant 0 : i32
    %c0_i32_0 = arith.constant 0 : i32
    %c0_i32_1 = arith.constant 0 : i32
    return %c0_i32, %c0_i32_0 : i32, i32
  }
  func.func @transform_2(%arg0: i32) -> (i32, i32) {
    %c0_i32 = arith.constant 0 : i32
    %c0_i32_0 = arith.constant 0 : i32
    %c0_i32_1 = arith.constant 0 : i32
    return %c0_i32, %c0_i32_0 : i32, i32
  }
  func.func @transform_3(%arg0: i32) -> (i32, i32) {
    %c0_i32 = arith.constant 0 : i32
    %c0_i32_0 = arith.constant 0 : i32
    %c0_i32_1 = arith.constant 0 : i32
    return %c0_i32, %c0_i32_0 : i32, i32
  }
  func.func @transform_4(%arg0: i32) -> (i32, i32) {
    %c0_i32 = arith.constant 0 : i32
    %c0_i32_0 = arith.constant 0 : i32
    %c0_i32_1 = arith.constant 0 : i32
    return %c0_i32, %c0_i32_0 : i32, i32
  }
  func.func @transform_5(%arg0: i32) -> (i32, i32) {
    %c0_i32 = arith.constant 0 : i32
    %c0_i32_0 = arith.constant 0 : i32
    %c0_i32_1 = arith.constant 0 : i32
    return %c0_i32, %c0_i32_0 : i32, i32
  }
  func.func @transform_6(%arg0: i32) -> (i32, i32, i32) {
    %c0_i32 = arith.constant 0 : i32
    %c0_i32_0 = arith.constant 0 : i32
    %c0_i32_1 = arith.constant 0 : i32
    return %arg0, %c0_i32, %c0_i32_0 : i32, i32, i32
  }
}

</mosaic_0001>

<llo_original>
// kernel: pooling_forward.2
$region0: #{pooling_forward.2}
  #allocation0 [shape = 'u32[]', space=smem, size = 0x4, offset = 0x4, fixed_abs, tag = 'smem constant byte address 0x4 - core index']
  #allocation1 [shape = 'u32[144,128]{1,0:T(1,128)}', space=vmem, size = 0x12000, scoped, tag = 'internal scratch']
  %s0 = inlined_call_operand.vmem [shape: f32[2,4,256], index: 0, kind: input, shape index: {}]
  %s1 = inlined_call_operand.vmem [shape: f32[8,4], index: 1, kind: input, shape index: {}]
  %s2 = inlined_call_operand.vmem [shape: f32[2,8,2], index: 2, kind: output, shape index: {}]
  %s3 = sld [smem:[#allocation0]]
  $region41: #{pooling_forward.2} parent=0
    _
  %s5 = ssub.s32 1, %s3
  %s6 = scalar_select 0, %s5, %s3
  loop: start=0, step=1, limit=4
  $region2: #{pooling_forward.2} parent=0 // loop_pre_header
    _
  $region3: #{pooling_forward.2} parent=0 // loop_header
    %s8 = sphi 0, %s12
    %p9 = scmp.ge.s32.totalorder %s8, 4
    %s18 = sphi 0, %s20
    %s21 = sphi 0, %s18
    %s22 = sphi 0, %s21
    %s38 = sphi 0, %s22
    %s42 = sphi 0, %s42
    %s44 = sphi 0, %s42
    %s45 = sphi 0, %s44
    %s59 = sphi 0, %s45
    %s65 = sphi 0, %s67
    %s68 = sphi 0, %s65
    %s69 = sphi 0, %s68
    %s85 = sphi 0, %s69
  $region4: #{pooling_forward.2} parent=0 // loop_header_branch
    %11 = sbr.rel (%p9) target = $region8
  $region5: #{pooling_forward.2} parent=0 // loop_body
    %s13 = ssub.s32 %s8, 1
    %s14 = ssub.s32 %s8, 2
    %s15 = sadd.s32 %s8, 1
    %s16 = ssub.s32 %s8, %s15
    %p17 = scmp.eq.s32.totalorder %s16, 0
    %s19 = sadd.s32 %s18, 1
    %s20 = scalar_select %p17, %s18, %s19
    %p23 = pneg %p17
    %p24 = scmp.eq.s32.totalorder %s8, 1
    %p25 = por %p23, %p24
    %p26 = scmp.ne.s32.totalorder %s18, %s21
    %p27 = scmp.eq.s32.totalorder %s8, 0
    %p28 = por %p26, %p27
    %p29 = scmp.ne.s32.totalorder %s18, %s21
    %p30 = scmp.eq.s32.totalorder %s13, 1
    %p31 = por %p29, %p30
    %p32 = scmp.ne.s32.totalorder %s21, %s22
    %p33 = scmp.eq.s32.totalorder %s13, 0
    %p34 = por %p32, %p33
    %p35 = scmp.ne.s32.totalorder %s21, %s22
    %p36 = scmp.eq.s32.totalorder %s14, 1
    %p37 = por %p35, %p36
    %p39 = scmp.ne.s32.totalorder %s22, %s38
    %p40 = scmp.eq.s32.totalorder %s14, 0
    %p41 = por %p39, %p40
    %s43 = sadd.s32 %s42, 1
    %p46 = scmp.eq.s32.totalorder %s8, 1
    %p47 = scmp.ne.s32.totalorder %s42, %s44
    %p48 = scmp.eq.s32.totalorder %s8, 0
    %p49 = por %p47, %p48
    %p50 = scmp.ne.s32.totalorder %s42, %s44
    %p51 = scmp.eq.s32.totalorder %s13, 1
    %p52 = por %p50, %p51
    %p53 = scmp.ne.s32.totalorder %s44, %s45
    %p54 = scmp.eq.s32.totalorder %s13, 0
    %p55 = por %p53, %p54
    %p56 = scmp.ne.s32.totalorder %s44, %s45
    %p57 = scmp.eq.s32.totalorder %s14, 1
    %p58 = por %p56, %p57
    %p60 = scmp.ne.s32.totalorder %s45, %s59
    %p61 = scmp.eq.s32.totalorder %s14, 0
    %p62 = por %p60, %p61
    %s63 = ssub.s32 %s8, %s15
    %p64 = scmp.eq.s32.totalorder %s63, 0
    %s66 = sadd.s32 %s65, 1
    %s67 = scalar_select %p64, %s65, %s66
    %p70 = pneg %p64
    %p71 = scmp.eq.s32.totalorder %s8, 1
    %p72 = por %p70, %p71
    %p73 = scmp.ne.s32.totalorder %s65, %s68
    %p74 = scmp.eq.s32.totalorder %s8, 0
    %p75 = por %p73, %p74
    %p76 = scmp.ne.s32.totalorder %s65, %s68
    %p77 = scmp.eq.s32.totalorder %s13, 1
    %p78 = por %p76, %p77
    %p79 = scmp.ne.s32.totalorder %s68, %s69
    %p80 = scmp.eq.s32.totalorder %s13, 0
    %p81 = por %p79, %p80
    %p82 = scmp.ne.s32.totalorder %s68, %s69
    %p83 = scmp.eq.s32.totalorder %s14, 1
    %p84 = por %p82, %p83
    %p86 = scmp.ne.s32.totalorder %s69, %s85
    %p87 = scmp.eq.s32.totalorder %s14, 0
    %p88 = por %p86, %p87
    %p89 = scmp.le.s32.totalorder 1, %s8
    %p90 = scmp.lt.s32.totalorder %s8, 3
    %p91 = pnand %p89, %p90
    %p92 = pneg %p91
    // Predicated region
    $region9: #{pooling_forward.2} parent=5 // pred_check
      _
    $region10: #{pooling_forward.2} parent=5 // pred_check_branch
      %94 = sbr.rel (%p91) target = $region12
    $region11: #{pooling_forward.2} parent=5 // pred_region
      %s95 = ssub.s32 %s8, 1
      // Predicated region
      $region13: #{pooling_forward.2} parent=11 // pred_check
        %p96 = pneg %p55
      $region14: #{pooling_forward.2} parent=11 // pred_check_branch
        %98 = sbr.rel (%p96) target = $region16
      $region15: #{pooling_forward.2} parent=11 // pred_region
        _
      $region16: #{pooling_forward.2} parent=11 // pred_fallthru
        _
    $region12: #{pooling_forward.2} parent=5 // pred_fallthru
      _
    %p99 = scmp.lt.s32.totalorder %s8, 2
    // Predicated region
    $region17: #{pooling_forward.2} parent=5 // pred_check
      %p100 = pneg %p99
    $region18: #{pooling_forward.2} parent=5 // pred_check_branch
      %102 = sbr.rel (%p100) target = $region20
    $region19: #{pooling_forward.2} parent=5 // pred_region
      // Predicated region
      $region21: #{pooling_forward.2} parent=19 // pred_check
        %p103 = pneg %p28
      $region22: #{pooling_forward.2} parent=19 // pred_check_branch
        %105 = sbr.rel (%p103) target = $region24
      $region23: #{pooling_forward.2} parent=19 // pred_region
        %p106 = scmp.lt.s32.totalorder %s8, 1
        %s107 = scalar_select %p106, %s8, 1
        %s108 = smul.addr %s107, 2
        %s109 = smul.addr %s108, 4
        %s110 = scalar_lea.vmem %s0, %s109
      $region24: #{pooling_forward.2} parent=19 // pred_fallthru
        _
    $region20: #{pooling_forward.2} parent=5 // pred_fallthru
      _
    %p111 = scmp.le.s32.totalorder 1, %s8
    %p112 = scmp.lt.s32.totalorder %s8, 3
    %p113 = pnand %p111, %p112
    %p114 = pneg %p113
    // Predicated region
    $region25: #{pooling_forward.2} parent=5 // pred_check
      _
    $region26: #{pooling_forward.2} parent=5 // pred_check_branch
      %116 = sbr.rel (%p113) target = $region28
    $region27: #{pooling_forward.2} parent=5 // pred_region
      %s117 = ssub.s32 %s8, 1
      %p118 = scmp.lt.s32.totalorder %s13, 1
      %s119 = scalar_select %p118, %s13, 1
      %s120 = smul.addr %s119, 2
      %s121 = smul.addr %s120, 4
      %s122 = scalar_lea.vmem %s0, %s121
      %p123 = pneg %p34
      %p124 = pneg %p31
      %p125 = pneg %p55
      %p126 = pneg %p52
      %p127 = pneg %p81
      %p128 = pneg %p78
      %p129 = scmp.lt.s32.totalorder %s13, 1
      %s130 = scalar_select %p129, %s13, 1
      %s131 = smul.addr %s130, 8
      %s132 = scalar_lea.vmem %s2, %s131
      %p133 = scmp.lt.s32.totalorder %s13, 1
      %s134 = scalar_select %p133, %s13, 1
      %s135 = smul.addr %s134, 2
      %s136 = smul.addr %s135, 4
      %s137 = scalar_lea.vmem %s0, %s136
      %p138 = scmp.lt.s32.totalorder %s13, 1
      %s139 = scalar_select %p138, %s13, 1
      %s140 = smul.addr %s139, 8
      %s141 = scalar_lea.vmem %s2, %s140
      %v142 = vld [vmem:[%s1] sm:$0xff]
      %v143 = vld [vmem:[%s137] sm:$0xff]
      %v144 = vmax.f32 %v143, 0.0
      %v146 = vcombine.high %v144, %v144
      %vm147 = vcmask 31744
      %v149 = vsel %vm147, %v142, 0
      %vm151 = vcmask 1043456
      %v152 = vsel %vm151, %v144, 0
      %v154 = vsel %vm151, %v146, 0
      %156 = vmatprep.subr.mxu0 %v154
      %157 = vmatpush1.msra.mxu0 %v152
      %158 = vmatprep.subr.mxu0 0.0
      %159 = vmatpush1.msra.mxu0 0.0
      %160 = vmatprep.subr.mxu0 0.0
      %161 = vmatpush1.msra.mxu0 0.0
      %162 = vmatprep.subr.mxu0 0.0
      %163 = vmatpush1.msra.mxu0 0.0
      %164 = vmatprep.subr.mxu0 0.0
      %165 = vmatpush1.msra.mxu0 0.0
      %166 = vmatprep.subr.mxu0 0.0
      %167 = vmatpush1.msra.mxu0 0.0
      %168 = vmatprep.subr.mxu0 0.0
      %169 = vmatpush1.msra.mxu0 0.0
      %170 = vmatprep.subr.mxu0 0.0
      %171 = vmatpush1.msra.mxu0 0.0
      %172 = vmatprep.subr.mxu0 0.0
      %173 = vmatpush1.msra.mxu0 0.0
      %174 = vmatprep.subr.mxu0 0.0
      %175 = vmatpush1.msra.mxu0 0.0
      %176 = vmatprep.subr.mxu0 0.0
      %177 = vmatpush1.msra.mxu0 0.0
      %178 = vmatprep.subr.mxu0 0.0
      %179 = vmatpush1.msra.mxu0 0.0
      %180 = vmatprep.subr.mxu0 0.0
      %181 = vmatpush1.msra.mxu0 0.0
      %182 = vmatprep.subr.mxu0 0.0
      %183 = vmatpush1.msra.mxu0 0.0
      %184 = vmatprep.subr.mxu0 0.0
      %185 = vmatpush1.msra.mxu0 0.0
      %186 = vmatprep.subr.mxu0 0.0
      %187 = vmatpush1.msra.mxu0 0.0
      %188 = vmatprep.subr.mxu0 0.0
      %189 = vmatpush1.msra.mxu0 0.0
      %190 = vmatprep.subr.mxu0 0.0
      %191 = vmatpush1.msra.mxu0 0.0
      %192 = vmatprep.subr.mxu0 0.0
      %193 = vmatpush1.msra.mxu0 0.0
      %194 = vmatprep.subr.mxu0 0.0
      %195 = vmatpush1.msra.mxu0 0.0
      %196 = vmatprep.subr.mxu0 0.0
      %197 = vmatpush1.msra.mxu0 0.0
      %198 = vmatprep.subr.mxu0 0.0
      %199 = vmatpush1.msra.mxu0 0.0
      %200 = vmatprep.subr.mxu0 0.0
      %201 = vmatpush1.msra.mxu0 0.0
      %202 = vmatprep.subr.mxu0 0.0
      %203 = vmatpush1.msra.mxu0 0.0
      %204 = vmatprep.subr.mxu0 0.0
      %205 = vmatpush1.msra.mxu0 0.0
      %206 = vmatprep.subr.mxu0 0.0
      %207 = vmatpush1.msra.mxu0 0.0
      %208 = vmatprep.subr.mxu0 0.0
      %209 = vmatpush1.msra.mxu0 0.0
      %210 = vmatprep.subr.mxu0 0.0
      %211 = vmatpush1.msra.mxu0 0.0
      %212 = vmatprep.subr.mxu0 0.0
      %213 = vmatpush1.msra.mxu0 0.0
      %214 = vmatprep.subr.mxu0 0.0
      %215 = vmatpush1.msra.mxu0 0.0
      %216 = vmatprep.subr.mxu0 0.0
      %217 = vmatpush1.msra.mxu0 0.0
      %218 = vmatprep.subr.mxu0 0.0
      %219 = vmatpush1.msra.mxu0 0.0
      %220 = vmatprep.mubr.f32.mxu0 0.0
      %221 = vmatmul.mubr.f32.gmra.mrb[0].mxu0 %v149
      %v222 = vpop.f32.mrb[0].mxu0
      %v223 = vadd.f32 0.0, %v222
      %v224 = vpop.f32.mrb[0].mxu0
      %v225 = vadd.f32 0.0, %v224
      %226 = vdwg.mxu0
      %p227 = scmp.lt.s32.totalorder %s13, 2
      %v228 = vadd.f32 %v223, %v225
      %229 = vadd.xlane.f32.xlu0 %v228
      %v230 = vpop.xlane.xlu0 %229
      %s231 = scalar_select %p227, 1, 0
      %v232 = vstv %s231
      %vm233 = vcmp.eq.s32.totalorder %v232, 1
      %v234 = vsel %vm233, %v230, 0.0
      %v235 = vadd.f32 %v234, 0.0
      %v236 = vmul.f32 %v223, %v223
      %v237 = vmul.f32 %v225, %v225
      %v238 = vadd.f32 %v236, %v237
      %239 = vadd.xlane.f32.xlu0 %v238
      %v240 = vpop.xlane.xlu0 %239
      %v241 = vsel %vm233, %v240, 0.0
      %v242 = vadd.f32 %v241, 0.0
      %vm243 = vcmask 7168
      %v244 = vsel %vm243, %v235, %v242
      %vm245 = vcmask 15360
      %246 = vst.msk [vmem:[%s141] sm:$0xff] %vm245, %v244
      %p247 = scmp.lt.s32.totalorder %s13, 1
      %s248 = scalar_select %p247, %s13, 1
      %s249 = smul.addr %s248, 8
      %s250 = scalar_lea.vmem %s2, %s249
      // Predicated region
      $region29: #{pooling_forward.2} parent=27 // pred_check
        %p251 = pneg %p78
      $region30: #{pooling_forward.2} parent=27 // pred_check_branch
        %253 = sbr.rel (%p251) target = $region32
      $region31: #{pooling_forward.2} parent=27 // pred_region
        _
      $region32: #{pooling_forward.2} parent=27 // pred_fallthru
        _
    $region28: #{pooling_forward.2} parent=5 // pred_fallthru
      _
    %p254 = scmp.le.s32.totalorder 2, %s8
    // Predicated region
    $region33: #{pooling_forward.2} parent=5 // pred_check
      %p255 = pneg %p254
    $region34: #{pooling_forward.2} parent=5 // pred_check_branch
      %257 = sbr.rel (%p255) target = $region36
    $region35: #{pooling_forward.2} parent=5 // pred_region
      %s258 = ssub.s32 %s8, 2
      // Predicated region
      $region37: #{pooling_forward.2} parent=35 // pred_check
        %p259 = pneg %p84
      $region38: #{pooling_forward.2} parent=35 // pred_check_branch
        %261 = sbr.rel (%p259) target = $region40
      $region39: #{pooling_forward.2} parent=35 // pred_region
        %p262 = scmp.lt.s32.totalorder %s14, 1
        %s263 = scalar_select %p262, %s14, 1
        %s264 = smul.addr %s263, 8
        %s265 = scalar_lea.vmem %s2, %s264
      $region40: #{pooling_forward.2} parent=35 // pred_fallthru
        _
    $region36: #{pooling_forward.2} parent=5 // pred_fallthru
      _
  $region6: #{pooling_forward.2} parent=0 // loop_footer
    %s12 = sadd.s32 1, %s8
  $region7: #{pooling_forward.2} parent=0 // loop_footer_branch
    %7 = sbr.rel target = $region3
  $region8: #{pooling_forward.2} parent=0 // loop_exit
    _

// kernel: pooling_forward.3
$region0: #{pooling_forward.3}
  #allocation0 [shape = 'u32[]', space=smem, size = 0x4, offset = 0x4, fixed_abs, tag = 'smem constant byte address 0x4 - core index']
  #allocation1 [shape = 'u32[144,128]{1,0:T(1,128)}', space=vmem, size = 0x12000, scoped, tag = 'internal scratch']
  %s0 = inlined_call_operand.vmem [shape: f32[2,4,256], index: 0, kind: input, shape index: {}]
  %s1 = inlined_call_operand.vmem [shape: f32[8,4], index: 1, kind: input, shape index: {}]
  %s2 = inlined_call_operand.vmem [shape: f32[8,1], index: 2, kind: input, shape index: {}]
  %s3 = inlined_call_operand.vmem [shape: f32[8,1], index: 3, kind: input, shape index: {}]
  %s4 = inlined_call_operand.vmem [shape: f32[4,256], index: 4, kind: input, shape index: {}]
  %s5 = inlined_call_operand.vmem [shape: f32[256,64], index: 5, kind: input, shape index: {}]
  %s6 = inlined_call_operand.vmem [shape: f32[2,8,64], index: 6, kind: output, shape index: {}]
  %s7 = sld [smem:[#allocation0]]
  $region57: #{pooling_forward.3} parent=0
    _
  %s9 = ssub.s32 1, %s7
  %s10 = scalar_select 0, %s9, %s7
  loop: start=0, step=1, limit=4
  $region2: #{pooling_forward.3} parent=0 // loop_pre_header
    _
  $region3: #{pooling_forward.3} parent=0 // loop_header
    %s12 = sphi 0, %s16
    %p13 = scmp.ge.s32.totalorder %s12, 4
    %s22 = sphi 0, %s24
    %s25 = sphi 0, %s22
    %s26 = sphi 0, %s25
    %s42 = sphi 0, %s26
    %s46 = sphi 0, %s46
    %s48 = sphi 0, %s46
    %s49 = sphi 0, %s48
    %s63 = sphi 0, %s49
    %s67 = sphi 0, %s67
    %s69 = sphi 0, %s67
    %s70 = sphi 0, %s69
    %s84 = sphi 0, %s70
    %s88 = sphi 0, %s88
    %s90 = sphi 0, %s88
    %s91 = sphi 0, %s90
    %s105 = sphi 0, %s91
    %s109 = sphi 0, %s109
    %s111 = sphi 0, %s109
    %s112 = sphi 0, %s111
    %s126 = sphi 0, %s112
    %s130 = sphi 0, %s130
    %s132 = sphi 0, %s130
    %s133 = sphi 0, %s132
    %s147 = sphi 0, %s133
    %s153 = sphi 0, %s155
    %s156 = sphi 0, %s153
    %s157 = sphi 0, %s156
    %s173 = sphi 0, %s157
  $region4: #{pooling_forward.3} parent=0 // loop_header_branch
    %15 = sbr.rel (%p13) target = $region8
  $region5: #{pooling_forward.3} parent=0 // loop_body
    %s17 = ssub.s32 %s12, 1
    %s18 = ssub.s32 %s12, 2
    %s19 = sadd.s32 %s12, 1
    %s20 = ssub.s32 %s12, %s19
    %p21 = scmp.eq.s32.totalorder %s20, 0
    %s23 = sadd.s32 %s22, 1
    %s24 = scalar_select %p21, %s22, %s23
    %p27 = pneg %p21
    %p28 = scmp.eq.s32.totalorder %s12, 1
    %p29 = por %p27, %p28
    %p30 = scmp.ne.s32.totalorder %s22, %s25
    %p31 = scmp.eq.s32.totalorder %s12, 0
    %p32 = por %p30, %p31
    %p33 = scmp.ne.s32.totalorder %s22, %s25
    %p34 = scmp.eq.s32.totalorder %s17, 1
    %p35 = por %p33, %p34
    %p36 = scmp.ne.s32.totalorder %s25, %s26
    %p37 = scmp.eq.s32.totalorder %s17, 0
    %p38 = por %p36, %p37
    %p39 = scmp.ne.s32.totalorder %s25, %s26
    %p40 = scmp.eq.s32.totalorder %s18, 1
    %p41 = por %p39, %p40
    %p43 = scmp.ne.s32.totalorder %s26, %s42
    %p44 = scmp.eq.s32.totalorder %s18, 0
    %p45 = por %p43, %p44
    %s47 = sadd.s32 %s46, 1
    %p50 = scmp.eq.s32.totalorder %s12, 1
    %p51 = scmp.ne.s32.totalorder %s46, %s48
    %p52 = scmp.eq.s32.totalorder %s12, 0
    %p53 = por %p51, %p52
    %p54 = scmp.ne.s32.totalorder %s46, %s48
    %p55 = scmp.eq.s32.totalorder %s17, 1
    %p56 = por %p54, %p55
    %p57 = scmp.ne.s32.totalorder %s48, %s49
    %p58 = scmp.eq.s32.totalorder %s17, 0
    %p59 = por %p57, %p58
    %p60 = scmp.ne.s32.totalorder %s48, %s49
    %p61 = scmp.eq.s32.totalorder %s18, 1
    %p62 = por %p60, %p61
    %p64 = scmp.ne.s32.totalorder %s49, %s63
    %p65 = scmp.eq.s32.totalorder %s18, 0
    %p66 = por %p64, %p65
    %s68 = sadd.s32 %s67, 1
    %p71 = scmp.eq.s32.totalorder %s12, 1
    %p72 = scmp.ne.s32.totalorder %s67, %s69
    %p73 = scmp.eq.s32.totalorder %s12, 0
    %p74 = por %p72, %p73
    %p75 = scmp.ne.s32.totalorder %s67, %s69
    %p76 = scmp.eq.s32.totalorder %s17, 1
    %p77 = por %p75, %p76
    %p78 = scmp.ne.s32.totalorder %s69, %s70
    %p79 = scmp.eq.s32.totalorder %s17, 0
    %p80 = por %p78, %p79
    %p81 = scmp.ne.s32.totalorder %s69, %s70
    %p82 = scmp.eq.s32.totalorder %s18, 1
    %p83 = por %p81, %p82
    %p85 = scmp.ne.s32.totalorder %s70, %s84
    %p86 = scmp.eq.s32.totalorder %s18, 0
    %p87 = por %p85, %p86
    %s89 = sadd.s32 %s88, 1
    %p92 = scmp.eq.s32.totalorder %s12, 1
    %p93 = scmp.ne.s32.totalorder %s88, %s90
    %p94 = scmp.eq.s32.totalorder %s12, 0
    %p95 = por %p93, %p94
    %p96 = scmp.ne.s32.totalorder %s88, %s90
    %p97 = scmp.eq.s32.totalorder %s17, 1
    %p98 = por %p96, %p97
    %p99 = scmp.ne.s32.totalorder %s90, %s91
    %p100 = scmp.eq.s32.totalorder %s17, 0
    %p101 = por %p99, %p100
    %p102 = scmp.ne.s32.totalorder %s90, %s91
    %p103 = scmp.eq.s32.totalorder %s18, 1
    %p104 = por %p102, %p103
    %p106 = scmp.ne.s32.totalorder %s91, %s105
    %p107 = scmp.eq.s32.totalorder %s18, 0
    %p108 = por %p106, %p107
    %s110 = sadd.s32 %s109, 1
    %p113 = scmp.eq.s32.totalorder %s12, 1
    %p114 = scmp.ne.s32.totalorder %s109, %s111
    %p115 = scmp.eq.s32.totalorder %s12, 0
    %p116 = por %p114, %p115
    %p117 = scmp.ne.s32.totalorder %s109, %s111
    %p118 = scmp.eq.s32.totalorder %s17, 1
    %p119 = por %p117, %p118
    %p120 = scmp.ne.s32.totalorder %s111, %s112
    %p121 = scmp.eq.s32.totalorder %s17, 0
    %p122 = por %p120, %p121
    %p123 = scmp.ne.s32.totalorder %s111, %s112
    %p124 = scmp.eq.s32.totalorder %s18, 1
    %p125 = por %p123, %p124
    %p127 = scmp.ne.s32.totalorder %s112, %s126
    %p128 = scmp.eq.s32.totalorder %s18, 0
    %p129 = por %p127, %p128
    %s131 = sadd.s32 %s130, 1
    %p134 = scmp.eq.s32.totalorder %s12, 1
    %p135 = scmp.ne.s32.totalorder %s130, %s132
    %p136 = scmp.eq.s32.totalorder %s12, 0
    %p137 = por %p135, %p136
    %p138 = scmp.ne.s32.totalorder %s130, %s132
    %p139 = scmp.eq.s32.totalorder %s17, 1
    %p140 = por %p138, %p139
    %p141 = scmp.ne.s32.totalorder %s132, %s133
    %p142 = scmp.eq.s32.totalorder %s17, 0
    %p143 = por %p141, %p142
    %p144 = scmp.ne.s32.totalorder %s132, %s133
    %p145 = scmp.eq.s32.totalorder %s18, 1
    %p146 = por %p144, %p145
    %p148 = scmp.ne.s32.totalorder %s133, %s147
    %p149 = scmp.eq.s32.totalorder %s18, 0
    %p150 = por %p148, %p149
    %s151 = ssub.s32 %s12, %s19
    %p152 = scmp.eq.s32.totalorder %s151, 0
    %s154 = sadd.s32 %s153, 1
    %s155 = scalar_select %p152, %s153, %s154
    %p158 = pneg %p152
    %p159 = scmp.eq.s32.totalorder %s12, 1
    %p160 = por %p158, %p159
    %p161 = scmp.ne.s32.totalorder %s153, %s156
    %p162 = scmp.eq.s32.totalorder %s12, 0
    %p163 = por %p161, %p162
    %p164 = scmp.ne.s32.totalorder %s153, %s156
    %p165 = scmp.eq.s32.totalorder %s17, 1
    %p166 = por %p164, %p165
    %p167 = scmp.ne.s32.totalorder %s156, %s157
    %p168 = scmp.eq.s32.totalorder %s17, 0
    %p169 = por %p167, %p168
    %p170 = scmp.ne.s32.totalorder %s156, %s157
    %p171 = scmp.eq.s32.totalorder %s18, 1
    %p172 = por %p170, %p171
    %p174 = scmp.ne.s32.totalorder %s157, %s173
    %p175 = scmp.eq.s32.totalorder %s18, 0
    %p176 = por %p174, %p175
    %p177 = scmp.le.s32.totalorder 1, %s12
    %p178 = scmp.lt.s32.totalorder %s12, 3
    %p179 = pnand %p177, %p178
    %p180 = pneg %p179
    // Predicated region
    $region9: #{pooling_forward.3} parent=5 // pred_check
      _
    $region10: #{pooling_forward.3} parent=5 // pred_check_branch
      %182 = sbr.rel (%p179) target = $region12
    $region11: #{pooling_forward.3} parent=5 // pred_region
      %s183 = ssub.s32 %s12, 1
      // Predicated region
      $region13: #{pooling_forward.3} parent=11 // pred_check
        %p184 = pneg %p59
      $region14: #{pooling_forward.3} parent=11 // pred_check_branch
        %186 = sbr.rel (%p184) target = $region16
      $region15: #{pooling_forward.3} parent=11 // pred_region
        _
      $region16: #{pooling_forward.3} parent=11 // pred_fallthru
        _
      // Predicated region
      $region17: #{pooling_forward.3} parent=11 // pred_check
        %p187 = pneg %p80
      $region18: #{pooling_forward.3} parent=11 // pred_check_branch
        %189 = sbr.rel (%p187) target = $region20
      $region19: #{pooling_forward.3} parent=11 // pred_region
        _
      $region20: #{pooling_forward.3} parent=11 // pred_fallthru
        _
      // Predicated region
      $region21: #{pooling_forward.3} parent=11 // pred_check
        %p190 = pneg %p101
      $region22: #{pooling_forward.3} parent=11 // pred_check_branch
        %192 = sbr.rel (%p190) target = $region24
      $region23: #{pooling_forward.3} parent=11 // pred_region
        _
      $region24: #{pooling_forward.3} parent=11 // pred_fallthru
        _
      // Predicated region
      $region25: #{pooling_forward.3} parent=11 // pred_check
        %p193 = pneg %p122
      $region26: #{pooling_forward.3} parent=11 // pred_check_branch
        %195 = sbr.rel (%p193) target = $region28
      $region27: #{pooling_forward.3} parent=11 // pred_region
        _
      $region28: #{pooling_forward.3} parent=11 // pred_fallthru
        _
      // Predicated region
      $region29: #{pooling_forward.3} parent=11 // pred_check
        %p196 = pneg %p143
      $region30: #{pooling_forward.3} parent=11 // pred_check_branch
        %198 = sbr.rel (%p196) target = $region32
      $region31: #{pooling_forward.3} parent=11 // pred_region
        _
      $region32: #{pooling_forward.3} parent=11 // pred_fallthru
        _
    $region12: #{pooling_forward.3} parent=5 // pred_fallthru
      _
    %p199 = scmp.lt.s32.totalorder %s12, 2
    // Predicated region
    $region33: #{pooling_forward.3} parent=5 // pred_check
      %p200 = pneg %p199
    $region34: #{pooling_forward.3} parent=5 // pred_check_branch
      %202 = sbr.rel (%p200) target = $region36
    $region35: #{pooling_forward.3} parent=5 // pred_region
      // Predicated region
      $region37: #{pooling_forward.3} parent=35 // pred_check
        %p203 = pneg %p32
      $region38: #{pooling_forward.3} parent=35 // pred_check_branch
        %205 = sbr.rel (%p203) target = $region40
      $region39: #{pooling_forward.3} parent=35 // pred_region
        %p206 = scmp.lt.s32.totalorder %s12, 1
        %s207 = scalar_select %p206, %s12, 1
        %s208 = smul.addr %s207, 2
        %s209 = smul.addr %s208, 4
        %s210 = scalar_lea.vmem %s0, %s209
      $region40: #{pooling_forward.3} parent=35 // pred_fallthru
        _
    $region36: #{pooling_forward.3} parent=5 // pred_fallthru
      _
    %p211 = scmp.le.s32.totalorder 1, %s12
    %p212 = scmp.lt.s32.totalorder %s12, 3
    %p213 = pnand %p211, %p212
    %p214 = pneg %p213
    // Predicated region
    $region41: #{pooling_forward.3} parent=5 // pred_check
      _
    $region42: #{pooling_forward.3} parent=5 // pred_check_branch
      %216 = sbr.rel (%p213) target = $region44
    $region43: #{pooling_forward.3} parent=5 // pred_region
      %s217 = ssub.s32 %s12, 1
      %p218 = scmp.lt.s32.totalorder %s17, 1
      %s219 = scalar_select %p218, %s17, 1
      %s220 = smul.addr %s219, 2
      %s221 = smul.addr %s220, 4
      %s222 = scalar_lea.vmem %s0, %s221
      %p223 = pneg %p38
      %p224 = pneg %p35
      %p225 = pneg %p59
      %p226 = pneg %p56
      %p227 = pneg %p80
      %p228 = pneg %p77
      %p229 = pneg %p101
      %p230 = pneg %p98
      %p231 = pneg %p122
      %p232 = pneg %p119
      %p233 = pneg %p143
      %p234 = pneg %p140
      %p235 = pneg %p169
      %p236 = pneg %p166
      %p237 = scmp.lt.s32.totalorder %s17, 1
      %s238 = scalar_select %p237, %s17, 1
      %s239 = smul.addr %s238, 8
      %s240 = scalar_lea.vmem %s6, %s239
      %p241 = scmp.lt.s32.totalorder %s17, 1
      %s242 = scalar_select %p241, %s17, 1
      %s243 = smul.addr %s242, 2
      %s244 = smul.addr %s243, 4
      %s245 = scalar_lea.vmem %s0, %s244
      %p246 = scmp.lt.s32.totalorder %s17, 1
      %s247 = scalar_select %p246, %s17, 1
      %s248 = smul.addr %s247, 8
      %s249 = scalar_lea.vmem %s6, %s248
      %v250 = vld [vmem:[%s4] ss:$4 sm:$0x3]
      %s251 = scalar_lea.vmem %s4, 1
      %v252 = vld [vmem:[%s251] ss:$4 sm:$0x3]
      %s253 = scalar_lea.vmem %s4, 2
      %v254 = vld [vmem:[%s253] ss:$4 sm:$0x3]
      %s255 = scalar_lea.vmem %s4, 3
      %v256 = vld [vmem:[%s255] ss:$4 sm:$0x3]
      %v257 = vld [vmem:[%s5] sm:$0xff]
      %v258 = vld [vmem:[%s5 + $0x8] sm:$0xff]
      %v259 = vld [vmem:[%s5 + $0x10] sm:$0xff]
      %v260 = vld [vmem:[%s5 + $0x18] sm:$0xff]
      %v261 = vld [vmem:[%s5 + $0x20] sm:$0xff]
      %v262 = vld [vmem:[%s5 + $0x28] sm:$0xff]
      %v263 = vld [vmem:[%s5 + $0x30] sm:$0xff]
      %v264 = vld [vmem:[%s5 + $0x38] sm:$0xff]
      %v265 = vld [vmem:[%s5 + $0x40] sm:$0xff]
      %v266 = vld [vmem:[%s5 + $0x48] sm:$0xff]
      %v267 = vld [vmem:[%s5 + $0x50] sm:$0xff]
      %v268 = vld [vmem:[%s5 + $0x58] sm:$0xff]
      %v269 = vld [vmem:[%s5 + $0x60] sm:$0xff]
      %v270 = vld [vmem:[%s5 + $0x68] sm:$0xff]
      %v271 = vld [vmem:[%s5 + $0x70] sm:$0xff]
      %v272 = vld [vmem:[%s5 + $0x78] sm:$0xff]
      %v273 = vld [vmem:[%s5 + $0x80] sm:$0xff]
      %v274 = vld [vmem:[%s5 + $0x88] sm:$0xff]
      %v275 = vld [vmem:[%s5 + $0x90] sm:$0xff]
      %v276 = vld [vmem:[%s5 + $0x98] sm:$0xff]
      %v277 = vld [vmem:[%s5 + $0xa0] sm:$0xff]
      %v278 = vld [vmem:[%s5 + $0xa8] sm:$0xff]
      %v279 = vld [vmem:[%s5 + $0xb0] sm:$0xff]
      %v280 = vld [vmem:[%s5 + $0xb8] sm:$0xff]
      %v281 = vld [vmem:[%s5 + $0xc0] sm:$0xff]
      %v282 = vld [vmem:[%s5 + $0xc8] sm:$0xff]
      %v283 = vld [vmem:[%s5 + $0xd0] sm:$0xff]
      %v284 = vld [vmem:[%s5 + $0xd8] sm:$0xff]
      %v285 = vld [vmem:[%s5 + $0xe0] sm:$0xff]
      %v286 = vld [vmem:[%s5 + $0xe8] sm:$0xff]
      %v287 = vld [vmem:[%s5 + $0xf0] sm:$0xff]
      %v288 = vld [vmem:[%s5 + $0xf8] sm:$0xff]
      %v289 = vld [vmem:[%s1] sm:$0xff]
      %v290 = vld [vmem:[%s2] sm:$0xff]
      %v291 = vld [vmem:[%s3] sm:$0xff]
      %v292 = vld [vmem:[%s245] sm:$0xff]
      %v293 = vmax.f32 %v292, 0.0
      %v295 = vcombine.high %v293, %v293
      %vm296 = vcmask 31744
      %v298 = vsel %vm296, %v289, 0
      %vm300 = vcmask 1043456
      %v301 = vsel %vm300, %v293, 0
      %v303 = vsel %vm300, %v295, 0
      %305 = vmatprep.subr.mxu0 %v303
      %306 = vmatpush1.msra.mxu0 %v301
      %307 = vmatprep.subr.mxu0 0.0
      %308 = vmatpush1.msra.mxu0 0.0
      %309 = vmatprep.subr.mxu0 0.0
      %310 = vmatpush1.msra.mxu0 0.0
      %311 = vmatprep.subr.mxu0 0.0
      %312 = vmatpush1.msra.mxu0 0.0
      %313 = vmatprep.subr.mxu0 0.0
      %314 = vmatpush1.msra.mxu0 0.0
      %315 = vmatprep.subr.mxu0 0.0
      %316 = vmatpush1.msra.mxu0 0.0
      %317 = vmatprep.subr.mxu0 0.0
      %318 = vmatpush1.msra.mxu0 0.0
      %319 = vmatprep.subr.mxu0 0.0
      %320 = vmatpush1.msra.mxu0 0.0
      %321 = vmatprep.subr.mxu0 0.0
      %322 = vmatpush1.msra.mxu0 0.0
      %323 = vmatprep.subr.mxu0 0.0
      %324 = vmatpush1.msra.mxu0 0.0
      %325 = vmatprep.subr.mxu0 0.0
      %326 = vmatpush1.msra.mxu0 0.0
      %327 = vmatprep.subr.mxu0 0.0
      %328 = vmatpush1.msra.mxu0 0.0
      %329 = vmatprep.subr.mxu0 0.0
      %330 = vmatpush1.msra.mxu0 0.0
      %331 = vmatprep.subr.mxu0 0.0
      %332 = vmatpush1.msra.mxu0 0.0
      %333 = vmatprep.subr.mxu0 0.0
      %334 = vmatpush1.msra.mxu0 0.0
      %335 = vmatprep.subr.mxu0 0.0
      %336 = vmatpush1.msra.mxu0 0.0
      %337 = vmatprep.subr.mxu0 0.0
      %338 = vmatpush1.msra.mxu0 0.0
      %339 = vmatprep.subr.mxu0 0.0
      %340 = vmatpush1.msra.mxu0 0.0
      %341 = vmatprep.subr.mxu0 0.0
      %342 = vmatpush1.msra.mxu0 0.0
      %343 = vmatprep.subr.mxu0 0.0
      %344 = vmatpush1.msra.mxu0 0.0
      %345 = vmatprep.subr.mxu0 0.0
      %346 = vmatpush1.msra.mxu0 0.0
      %347 = vmatprep.subr.mxu0 0.0
      %348 = vmatpush1.msra.mxu0 0.0
      %349 = vmatprep.subr.mxu0 0.0
      %350 = vmatpush1.msra.mxu0 0.0
      %351 = vmatprep.subr.mxu0 0.0
      %352 = vmatpush1.msra.mxu0 0.0
      %353 = vmatprep.subr.mxu0 0.0
      %354 = vmatpush1.msra.mxu0 0.0
      %355 = vmatprep.subr.mxu0 0.0
      %356 = vmatpush1.msra.mxu0 0.0
      %357 = vmatprep.subr.mxu0 0.0
      %358 = vmatpush1.msra.mxu0 0.0
      %359 = vmatprep.subr.mxu0 0.0
      %360 = vmatpush1.msra.mxu0 0.0
      %361 = vmatprep.subr.mxu0 0.0
      %362 = vmatpush1.msra.mxu0 0.0
      %363 = vmatprep.subr.mxu0 0.0
      %364 = vmatpush1.msra.mxu0 0.0
      %365 = vmatprep.subr.mxu0 0.0
      %366 = vmatpush1.msra.mxu0 0.0
      %367 = vmatprep.subr.mxu0 0.0
      %368 = vmatpush1.msra.mxu0 0.0
      %369 = vmatprep.mubr.f32.mxu0 0.0
      %370 = vmatmul.mubr.f32.gmra.mrb[0].mxu0 %v298
      %v371 = vpop.f32.mrb[0].mxu0
      %v372 = vadd.f32 0.0, %v371
      %v373 = vpop.f32.mrb[0].mxu0
      %v374 = vadd.f32 0.0, %v373
      %375 = vdwg.mxu0
      %377 = vset.pattern.permute.xlu0 0
      %378 = vperm.xlu0 %377, %v290
      %v379 = vpop.permute.xlu0 %378
      %v381 = vmul.f32 %v372, %v379
      %v382 = vmul.f32 %v374, %v379
      %384 = vset.pattern.permute.xlu0 0
      %385 = vperm.xlu0 %384, %v291
      %v386 = vpop.permute.xlu0 %385
      %v388 = vadd.f32 %v381, %v386
      %v389 = vadd.f32 %v382, %v386
      %390 = vrot.lane.b32.xlu0 %v388, 1
      %v391 = vpop.permute.xlu0 %390
      %392 = vrot.lane.b32.xlu0 %v389, 1
      %v393 = vpop.permute.xlu0 %392
      %v394 = vlaneseq
      %v395 = vand.u32 %v394, 127
      %vm396 = vcmp.lt.s32.totalorder %v395, 1
      %v397 = vsel %vm396, %v391, %v393
      %v398 = vsel %vm396, %v393, %v391
      %v400 = vlaneseq
      %v401 = vshrl.u32 %v400, 7
      %v402 = vsub.s32 0, %v401
      %v403 = vrot.slane %v250, %v402
      %v404 = vlaneseq
      %v405 = vshrl.u32 %v404, 7
      %v406 = vsub.s32 1, %v405
      %v407 = vrot.slane %v250, %v406
      %v410 = vmul.f32 %v398, %v403
      %v411 = vmul.f32 %v397, %v407
      %v412 = vadd.f32 %v388, %v410
      %v413 = vadd.f32 %v389, %v411
      %414 = vrot.lane.b32.xlu0 %v388, 127
      %v415 = vpop.permute.xlu0 %414
      %416 = vrot.lane.b32.xlu0 %v389, 127
      %v417 = vpop.permute.xlu0 %416
      %vm418 = vcmp.lt.s32.totalorder %v395, 127
      %v419 = vsel %vm418, %v415, %v417
      %v420 = vsel %vm418, %v417, %v415
      %v422 = vlaneseq
      %v423 = vshrl.u32 %v422, 7
      %v424 = vsub.s32 0, %v423
      %v425 = vrot.slane %v252, %v424
      %v426 = vlaneseq
      %v427 = vshrl.u32 %v426, 7
      %v428 = vsub.s32 1, %v427
      %v429 = vrot.slane %v252, %v428
      %v432 = vmul.f32 %v419, %v425
      %v433 = vmul.f32 %v420, %v429
      %v434 = vadd.f32 %v412, %v432
      %v435 = vadd.f32 %v413, %v433
      %436 = vrot.lane.b32.xlu0 %v434, 16
      %v437 = vpop.permute.xlu0 %436
      %438 = vrot.lane.b32.xlu0 %v435, 16
      %v439 = vpop.permute.xlu0 %438
      %vm440 = vcmp.lt.s32.totalorder %v395, 16
      %v441 = vsel %vm440, %v437, %v439
      %v442 = vsel %vm440, %v439, %v437
      %v444 = vlaneseq
      %v445 = vshrl.u32 %v444, 7
      %v446 = vsub.s32 0, %v445
      %v447 = vrot.slane %v254, %v446
      %v448 = vlaneseq
      %v449 = vshrl.u32 %v448, 7
      %v450 = vsub.s32 1, %v449
      %v451 = vrot.slane %v254, %v450
      %v454 = vmul.f32 %v442, %v447
      %v455 = vmul.f32 %v441, %v451
      %v456 = vadd.f32 %v434, %v454
      %v457 = vadd.f32 %v435, %v455
      %458 = vrot.lane.b32.xlu0 %v434, 112
      %v459 = vpop.permute.xlu0 %458
      %460 = vrot.lane.b32.xlu0 %v435, 112
      %v461 = vpop.permute.xlu0 %460
      %vm462 = vcmp.lt.s32.totalorder %v395, 112
      %v463 = vsel %vm462, %v459, %v461
      %v464 = vsel %vm462, %v461, %v459
      %v466 = vlaneseq
      %v467 = vshrl.u32 %v466, 7
      %v468 = vsub.s32 0, %v467
      %v469 = vrot.slane %v256, %v468
      %v470 = vlaneseq
      %v471 = vshrl.u32 %v470, 7
      %v472 = vsub.s32 1, %v471
      %v473 = vrot.slane %v256, %v472
      %v476 = vmul.f32 %v463, %v469
      %v477 = vmul.f32 %v464, %v473
      %v478 = vadd.f32 %v456, %v476
      %v479 = vadd.f32 %v457, %v477
      %480 = vmatprep.subr.mxu0 0.0
      %481 = vmatpush1.msra.mxu0 %v257
      %482 = vmatprep.subr.mxu0 0.0
      %483 = vmatpush1.msra.mxu0 %v258
      %484 = vmatprep.subr.mxu0 0.0
      %485 = vmatpush1.msra.mxu0 %v259
      %486 = vmatprep.subr.mxu0 0.0
      %487 = vmatpush1.msra.mxu0 %v260
      %488 = vmatprep.subr.mxu0 0.0
      %489 = vmatpush1.msra.mxu0 %v261
      %490 = vmatprep.subr.mxu0 0.0
      %491 = vmatpush1.msra.mxu0 %v262
      %492 = vmatprep.subr.mxu0 0.0
      %493 = vmatpush1.msra.mxu0 %v263
      %494 = vmatprep.subr.mxu0 0.0
      %495 = vmatpush1.msra.mxu0 %v264
      %496 = vmatprep.subr.mxu0 0.0
      %497 = vmatpush1.msra.mxu0 %v265
      %498 = vmatprep.subr.mxu0 0.0
      %499 = vmatpush1.msra.mxu0 %v266
      %500 = vmatprep.subr.mxu0 0.0
      %501 = vmatpush1.msra.mxu0 %v267
      %502 = vmatprep.subr.mxu0 0.0
      %503 = vmatpush1.msra.mxu0 %v268
      %504 = vmatprep.subr.mxu0 0.0
      %505 = vmatpush1.msra.mxu0 %v269
      %506 = vmatprep.subr.mxu0 0.0
      %507 = vmatpush1.msra.mxu0 %v270
      %508 = vmatprep.subr.mxu0 0.0
      %509 = vmatpush1.msra.mxu0 %v271
      %510 = vmatprep.subr.mxu0 0.0
      %511 = vmatpush1.msra.mxu0 %v272
      %512 = vmatprep.subr.mxu0 0.0
      %513 = vmatpush1.msra.mxu0 %v273
      %514 = vmatprep.subr.mxu0 0.0
      %515 = vmatpush1.msra.mxu0 %v274
      %516 = vmatprep.subr.mxu0 0.0
      %517 = vmatpush1.msra.mxu0 %v275
      %518 = vmatprep.subr.mxu0 0.0
      %519 = vmatpush1.msra.mxu0 %v276
      %520 = vmatprep.subr.mxu0 0.0
      %521 = vmatpush1.msra.mxu0 %v277
      %522 = vmatprep.subr.mxu0 0.0
      %523 = vmatpush1.msra.mxu0 %v278
      %524 = vmatprep.subr.mxu0 0.0
      %525 = vmatpush1.msra.mxu0 %v279
      %526 = vmatprep.subr.mxu0 0.0
      %527 = vmatpush1.msra.mxu0 %v280
      %528 = vmatprep.subr.mxu0 0.0
      %529 = vmatpush1.msra.mxu0 %v281
      %530 = vmatprep.subr.mxu0 0.0
      %531 = vmatpush1.msra.mxu0 %v282
      %532 = vmatprep.subr.mxu0 0.0
      %533 = vmatpush1.msra.mxu0 %v283
      %534 = vmatprep.subr.mxu0 0.0
      %535 = vmatpush1.msra.mxu0 %v284
      %536 = vmatprep.subr.mxu0 0.0
      %537 = vmatpush1.msra.mxu0 %v285
      %538 = vmatprep.subr.mxu0 0.0
      %539 = vmatpush1.msra.mxu0 %v286
      %540 = vmatprep.subr.mxu0 0.0
      %541 = vmatpush1.msra.mxu0 %v287
      %542 = vmatprep.subr.mxu0 0.0
      %543 = vmatpush1.msra.mxu0 %v288
      %544 = vmatprep.mubr.f32.mxu0 %v479
      %545 = vmatmul.mubr.f32.gmra.mrb[0].mxu0 %v478
      %v546 = vpop.f32.mrb[0].mxu0
      %v547 = vadd.f32 0.0, %v546
      %v548 = vpop.f32.mrb[0].mxu0
      %549 = vdwg.mxu0
      %vm550 = vcmask 523264
      %551 = vst.msk [vmem:[%s249] sm:$0xff] %vm550, %v547
      %p552 = scmp.lt.s32.totalorder %s17, 1
      %s553 = scalar_select %p552, %s17, 1
      %s554 = smul.addr %s553, 8
      %s555 = scalar_lea.vmem %s6, %s554
      // Predicated region
      $region45: #{pooling_forward.3} parent=43 // pred_check
        %p556 = pneg %p166
      $region46: #{pooling_forward.3} parent=43 // pred_check_branch
        %558 = sbr.rel (%p556) target = $region48
      $region47: #{pooling_forward.3} parent=43 // pred_region
        _
      $region48: #{pooling_forward.3} parent=43 // pred_fallthru
        _
    $region44: #{pooling_forward.3} parent=5 // pred_fallthru
      _
    %p559 = scmp.le.s32.totalorder 2, %s12
    // Predicated region
    $region49: #{pooling_forward.3} parent=5 // pred_check
      %p560 = pneg %p559
    $region50: #{pooling_forward.3} parent=5 // pred_check_branch
      %562 = sbr.rel (%p560) target = $region52
    $region51: #{pooling_forward.3} parent=5 // pred_region
      %s563 = ssub.s32 %s12, 2
      // Predicated region
      $region53: #{pooling_forward.3} parent=51 // pred_check
        %p564 = pneg %p172
      $region54: #{pooling_forward.3} parent=51 // pred_check_branch
        %566 = sbr.rel (%p564) target = $region56
      $region55: #{pooling_forward.3} parent=51 // pred_region
        %p567 = scmp.lt.s32.totalorder %s18, 1
        %s568 = scalar_select %p567, %s18, 1
        %s569 = smul.addr %s568, 8
        %s570 = scalar_lea.vmem %s6, %s569
      $region56: #{pooling_forward.3} parent=51 // pred_fallthru
        _
    $region52: #{pooling_forward.3} parent=5 // pred_fallthru
      _
  $region6: #{pooling_forward.3} parent=0 // loop_footer
    %s16 = sadd.s32 1, %s12
  $region7: #{pooling_forward.3} parent=0 // loop_footer_branch
    %11 = sbr.rel target = $region3
  $region8: #{pooling_forward.3} parent=0 // loop_exit
    _

</llo_original>
